<compile_context>
chip_gen: v7x
topology: tpu7x:2x2x1
jax: 0.10.0
libtpu: 0.0.40
codegen_flags: <defaults>
</compile_context>

<pallas_src>
import jax
import jax.numpy as jnp
from jax import lax
from jax.experimental import pallas as pl
from jax.experimental.pallas import tpu as pltpu


def item_embedding_kernel(x_ref, w1_ref, b1_ref, w2_ref, b2_ref, w3_ref, b3_ref,
                          o_ref):
    """One batch tile.

    x_ref : [TILE_B, input_size]        (natural layout, batch on sublanes)
    w*    : [out_features, in_features] (PyTorch layout, VMEM-resident)
    b1,b2 : [hidden, 1] columns ; b3 : [1, output_size] row
    o_ref : [TILE_B, output_size]
    """
    x = x_ref[...]                                            # [B, I]

    # Layer 1 + tanh, feature-major: contract w1's in-dim against x's feature
    # dim -> [H, B] (batch on the 128-lane axis; no materialized transpose,
    # Mosaic feeds the MXU with the transposed-RHS form directly).
    h1 = jnp.tanh(
        lax.dot_general(w1_ref[...], x, (((1,), (1,)), ((), ())),
                        preferred_element_type=jnp.float32)
        + b1_ref[...])
    # dropout1: identity (inference)

    # Layer 2 + tanh: [H, H] @ [H, B] -> [H, B]
    h2 = jnp.tanh(
        jnp.dot(w2_ref[...], h1, preferred_element_type=jnp.float32)
        + b2_ref[...])
    # dropout2: identity (inference)

    # Output layer, back to batch-major: contract h2's feature dim (axis 0)
    # against w3's in-dim -> [B, O]; stored directly (no wrapper transpose).
    out = lax.dot_general(h2, w3_ref[...], (((0,), (1,)), ((), ())),
                          preferred_element_type=jnp.float32) + b3_ref[...]
    o_ref[...] = out.astype(o_ref.dtype)


def _pick_tile(batch, tile_b_max):
    """Batch tile: lane-friendly multiple of 128, >=2 grid steps when the
    batch is large enough (v7x has 2 TCs), capped at tile_b_max."""
    if batch <= 256:
        return batch                      # single block == full dim (legal)
    half = pl.cdiv(batch, 2)
    return max(128, min(tile_b_max, pl.cdiv(half, 128) * 128))


def item_embedding_forward(x, params, *, tile_b=4096):
    """x: [batch, input_size]. params: PyTorch-layout weights/biases."""
    w1, b1 = params["w1"], params["b1"]
    w2, b2 = params["w2"], params["b2"]
    w3, b3 = params["w3"], params["b3"]

    batch, input_size = x.shape
    hidden_size = w1.shape[0]
    output_size = w3.shape[0]

    tb = _pick_tile(batch, tile_b)
    grid = (pl.cdiv(batch, tb),)          # ragged last tile handled by Pallas

    def resident(shape):
        # Same (only) block every grid step -> stays resident in VMEM.
        return pl.BlockSpec(shape, lambda i: (0, 0))

    itemsize = jnp.dtype(x.dtype).itemsize
    cost = pl.CostEstimate(
        flops=2 * batch * (input_size * hidden_size
                           + hidden_size * hidden_size
                           + hidden_size * output_size),
        transcendentals=2 * batch * hidden_size,
        bytes_accessed=(batch * (input_size + output_size) * itemsize
                        + sum(int(p.size) * jnp.dtype(p.dtype).itemsize
                              for p in (w1, b1, w2, b2, w3, b3))),
    )

    return pl.pallas_call(
        item_embedding_kernel,
        out_shape=jax.ShapeDtypeStruct((batch, output_size), x.dtype),
        grid=grid,
        in_specs=[
            pl.BlockSpec((tb, input_size), lambda i: (i, 0)),     # x tile
            resident((hidden_size, input_size)),                  # w1
            resident((hidden_size, 1)),                           # b1
            resident((hidden_size, hidden_size)),                 # w2
            resident((hidden_size, 1)),                           # b2
            resident((output_size, hidden_size)),                 # w3
            resident((1, output_size)),                           # b3
        ],
        out_specs=pl.BlockSpec((tb, output_size), lambda i: (i, 0)),
        compiler_params=pltpu.CompilerParams(
            # batch tiles are independent -> shard across 2 TCs on v7x
            dimension_semantics=("parallel",)),
        cost_estimate=cost,
    )(x, w1, b1, w2, b2, w3, b3)


def init_params(key, input_size, hidden_size, output_size):
    """nn.Linear-style init (uniform +/- 1/sqrt(fan_in)), PyTorch weight layout
    [out_features, in_features].  b1/b2 stored as [H,1] columns (feature-major
    adds), b3 as [1,O] row (batch-major output add)."""
    ks = jax.random.split(key, 6)

    def linear(kw, kb, fan_in, fan_out, bias_shape):
        bound = 1.0 / jnp.sqrt(fan_in)
        w = jax.random.uniform(kw, (fan_out, fan_in), jnp.float32, -bound, bound)
        b = jax.random.uniform(kb, bias_shape, jnp.float32, -bound, bound)
        return w, b

    w1, b1 = linear(ks[0], ks[1], input_size, hidden_size, (hidden_size, 1))
    w2, b2 = linear(ks[2], ks[3], hidden_size, hidden_size, (hidden_size, 1))
    w3, b3 = linear(ks[4], ks[5], hidden_size, output_size, (1, output_size))
    return {"w1": w1, "b1": b1, "w2": w2, "b2": b2, "w3": w3, "b3": b3}


def reference(x, params):
    # Pure-JAX reference (inference-mode dropout = identity).
    h = jnp.tanh(x @ params["w1"].T + params["b1"].T)
    h = jnp.tanh(h @ params["w2"].T + params["b2"].T)
    return h @ params["w3"].T + params["b3"]


if __name__ == "__main__":
    input_size, hidden_size, output_size = 16, 32, 8

    key = jax.random.PRNGKey(0)
    k_params, k_x1, k_x2 = jax.random.split(key, 3)
    params = init_params(k_params, input_size, hidden_size, output_size)

    # Small test (single full-array tile).
    batch = 4
    x = jax.random.normal(k_x1, (batch, input_size), jnp.float32)
    out = jax.block_until_ready(item_embedding_forward(x, params))
    ref = reference(x, params)
    assert out.shape == (batch, output_size)
    assert jnp.allclose(out, ref, atol=1e-5, rtol=1e-5)

    # Multi-tile test: grid=(2,) with a ragged final tile (1000 = 512 + 488),
    # exercising Pallas OOB-clipped reads/writes (no wrapper pad).
    batch2 = 1000
    x2 = jax.random.normal(k_x2, (batch2, input_size), jnp.float32)
    out2 = jax.block_until_ready(item_embedding_forward(x2, params))
    ref2 = reference(x2, params)
    assert out2.shape == (batch2, output_size)
    assert jnp.allclose(out2, ref2, atol=1e-5, rtol=1e-5)

    print("KERNEL_OK")
</pallas_src>

<mosaic_0001>
module attributes {stable_mosaic.version = 11 : i64} {
  func.func @item_embedding_kernel(%arg0: i32, %arg1: memref<4x16xf32, #tpu.memory_space<vmem>>, %arg2: memref<32x16xf32, #tpu.memory_space<vmem>>, %arg3: memref<32x1xf32, #tpu.memory_space<vmem>>, %arg4: memref<32x32xf32, #tpu.memory_space<vmem>>, %arg5: memref<32x1xf32, #tpu.memory_space<vmem>>, %arg6: memref<8x32xf32, #tpu.memory_space<vmem>>, %arg7: memref<1x8xf32, #tpu.memory_space<vmem>>, %arg8: memref<4x8xf32, #tpu.memory_space<vmem>>) attributes {dimension_semantics = [#tpu.dimension_semantics<parallel>], iteration_bounds = array<i64: 1>, scalar_prefetch = 0 : i64, scratch_operands = 0 : i64, tpu.core_type = #tpu.core_type<tc>, window_params = [{transform_indices = @transform_0, window_bounds = array<i64: 4, 16>}, {pipeline_mode = #tpu.pipeline_mode<synchronous>, transform_indices = @transform_1, window_bounds = array<i64: 32, 16>}, {pipeline_mode = #tpu.pipeline_mode<synchronous>, transform_indices = @transform_2, window_bounds = array<i64: 32, 1>}, {pipeline_mode = #tpu.pipeline_mode<synchronous>, transform_indices = @transform_3, window_bounds = array<i64: 32, 32>}, {pipeline_mode = #tpu.pipeline_mode<synchronous>, transform_indices = @transform_4, window_bounds = array<i64: 32, 1>}, {pipeline_mode = #tpu.pipeline_mode<synchronous>, transform_indices = @transform_5, window_bounds = array<i64: 8, 32>}, {pipeline_mode = #tpu.pipeline_mode<synchronous>, transform_indices = @transform_6, window_bounds = array<i64: 1, 8>}, {transform_indices = @transform_7, window_bounds = array<i64: 4, 8>}]} {
    %c0 = arith.constant 0 : index
    %c0_0 = arith.constant 0 : index
    %0 = vector.load %arg1[%c0, %c0_0] : memref<4x16xf32, #tpu.memory_space<vmem>>, vector<4x16xf32>
    %c0_1 = arith.constant 0 : index
    %c0_2 = arith.constant 0 : index
    %1 = vector.load %arg2[%c0_1, %c0_2] : memref<32x16xf32, #tpu.memory_space<vmem>>, vector<32x16xf32>
    %cst = arith.constant dense<0.000000e+00> : vector<32x4xf32>
    %2 = tpu.matmul %1, %0, %cst {dimension_numbers = #tpu.dot_dimension_numbers<[1], [1], [0], [0], [0, 0, 1, 0], [], []>} : vector<32x16xf32>, vector<4x16xf32>, vector<32x4xf32> -> vector<32x4xf32>
    %c0_3 = arith.constant 0 : index
    %c0_4 = arith.constant 0 : index
    %3 = vector.load %arg3[%c0_3, %c0_4] : memref<32x1xf32, #tpu.memory_space<vmem>>, vector<32x1xf32>
    %4 = vector.broadcast %3 : vector<32x1xf32> to vector<32x4xf32>
    %5 = arith.addf %2, %4 : vector<32x4xf32>
    %6 = math.tanh %5 : vector<32x4xf32>
    %c0_5 = arith.constant 0 : index
    %c0_6 = arith.constant 0 : index
    %7 = vector.load %arg4[%c0_5, %c0_6] : memref<32x32xf32, #tpu.memory_space<vmem>>, vector<32x32xf32>
    %cst_7 = arith.constant dense<0.000000e+00> : vector<32x4xf32>
    %8 = tpu.matmul %7, %6, %cst_7 {dimension_numbers = #tpu.dot_dimension_numbers<[1], [0], [0], [1], [0, 0, 1, 1], [], []>} : vector<32x32xf32>, vector<32x4xf32>, vector<32x4xf32> -> vector<32x4xf32>
    %c0_8 = arith.constant 0 : index
    %c0_9 = arith.constant 0 : index
    %9 = vector.load %arg5[%c0_8, %c0_9] : memref<32x1xf32, #tpu.memory_space<vmem>>, vector<32x1xf32>
    %10 = vector.broadcast %9 : vector<32x1xf32> to vector<32x4xf32>
    %11 = arith.addf %8, %10 : vector<32x4xf32>
    %12 = math.tanh %11 : vector<32x4xf32>
    %c0_10 = arith.constant 0 : index
    %c0_11 = arith.constant 0 : index
    %13 = vector.load %arg6[%c0_10, %c0_11] : memref<8x32xf32, #tpu.memory_space<vmem>>, vector<8x32xf32>
    %cst_12 = arith.constant dense<0.000000e+00> : vector<4x8xf32>
    %14 = tpu.matmul %12, %13, %cst_12 {dimension_numbers = #tpu.dot_dimension_numbers<[0], [1], [1], [0], [0, 1, 1, 0], [], []>} : vector<32x4xf32>, vector<8x32xf32>, vector<4x8xf32> -> vector<4x8xf32>
    %c0_13 = arith.constant 0 : index
    %c0_14 = arith.constant 0 : index
    %15 = vector.load %arg7[%c0_13, %c0_14] : memref<1x8xf32, #tpu.memory_space<vmem>>, vector<1x8xf32>
    %16 = vector.broadcast %15 : vector<1x8xf32> to vector<4x8xf32>
    %17 = arith.addf %14, %16 : vector<4x8xf32>
    %c0_15 = arith.constant 0 : index
    %c0_16 = arith.constant 0 : index
    %18 = vector.load %arg8[%c0_15, %c0_16] : memref<4x8xf32, #tpu.memory_space<vmem>>, vector<4x8xf32>
    tpu.vector_store %arg8[%c0_15, %c0_16], %17 {strides = array<i32>} : memref<4x8xf32, #tpu.memory_space<vmem>>, vector<4x8xf32>,
    return
  }
  func.func @transform_0(%arg0: i32) -> (i32, i32) {
    %c0_i32 = arith.constant 0 : i32
    %c0_i32_0 = arith.constant 0 : i32
    return %arg0, %c0_i32 : i32, i32
  }
  func.func @transform_1(%arg0: i32) -> (i32, i32) {
    %c0_i32 = arith.constant 0 : i32
    %c0_i32_0 = arith.constant 0 : i32
    %c0_i32_1 = arith.constant 0 : i32
    return %c0_i32, %c0_i32_0 : i32, i32
  }
  func.func @transform_2(%arg0: i32) -> (i32, i32) {
    %c0_i32 = arith.constant 0 : i32
    %c0_i32_0 = arith.constant 0 : i32
    %c0_i32_1 = arith.constant 0 : i32
    return %c0_i32, %c0_i32_0 : i32, i32
  }
  func.func @transform_3(%arg0: i32) -> (i32, i32) {
    %c0_i32 = arith.constant 0 : i32
    %c0_i32_0 = arith.constant 0 : i32
    %c0_i32_1 = arith.constant 0 : i32
    return %c0_i32, %c0_i32_0 : i32, i32
  }
  func.func @transform_4(%arg0: i32) -> (i32, i32) {
    %c0_i32 = arith.constant 0 : i32
    %c0_i32_0 = arith.constant 0 : i32
    %c0_i32_1 = arith.constant 0 : i32
    return %c0_i32, %c0_i32_0 : i32, i32
  }
  func.func @transform_5(%arg0: i32) -> (i32, i32) {
    %c0_i32 = arith.constant 0 : i32
    %c0_i32_0 = arith.constant 0 : i32
    %c0_i32_1 = arith.constant 0 : i32
    return %c0_i32, %c0_i32_0 : i32, i32
  }
  func.func @transform_6(%arg0: i32) -> (i32, i32) {
    %c0_i32 = arith.constant 0 : i32
    %c0_i32_0 = arith.constant 0 : i32
    %c0_i32_1 = arith.constant 0 : i32
    return %c0_i32, %c0_i32_0 : i32, i32
  }
  func.func @transform_7(%arg0: i32) -> (i32, i32) {
    %c0_i32 = arith.constant 0 : i32
    %c0_i32_0 = arith.constant 0 : i32
    return %arg0, %c0_i32 : i32, i32
  }
}

</mosaic_0001>

<llo_original>
// kernel: tpu_custom_call.1
$region0: #{tpu_custom_call.1}
  #allocation0 [shape = 'u32[]', space=smem, size = 0x4, offset = 0x4, fixed_abs, tag = 'smem constant byte address 0x4 - core index']
  #allocation1 [shape = 'u32[144,128]{1,0:T(1,128)}', space=vmem, size = 0x12000, scoped, tag = 'internal scratch']
  %s0 = inlined_call_operand.vmem [shape: f32[4,16], index: 0, kind: input, shape index: {}]
  %s1 = inlined_call_operand.vmem [shape: f32[32,16], index: 1, kind: input, shape index: {}]
  %s2 = inlined_call_operand.vmem [shape: f32[32,1], index: 2, kind: input, shape index: {}]
  %s3 = inlined_call_operand.vmem [shape: f32[32,32], index: 3, kind: input, shape index: {}]
  %s4 = inlined_call_operand.vmem [shape: f32[32,1], index: 4, kind: input, shape index: {}]
  %s5 = inlined_call_operand.vmem [shape: f32[8,32], index: 5, kind: input, shape index: {}]
  %s6 = inlined_call_operand.vmem [shape: f32[1,8], index: 6, kind: input, shape index: {}]
  %s7 = inlined_call_operand.hbm [shape: f32[4,8], index: 7, kind: output, shape index: {}]
  %s8 = sld [smem:[#allocation0]]
  $region38: #{tpu_custom_call.1} parent=0
    _
  %s10 = ssub.s32 1, %s8
  %s11 = scalar_select 0, %s10, %s8
  $region1: #{tpu_custom_call.1} parent=0
    #allocation2 [shape = 'u8[2048]{0}', space=vmem, size = 0x800, scoped, tag = 'output window, operand 0, single buffered']
    #allocation3 [shape = 's32[1]{0}', space=sflag, size = 0x4, scoped, tag = 'scoped memory for tpu_custom_call.1']
    %12 = vsyncpa [#allocation3], 0
    // Predicated region
    $region2: #{tpu_custom_call.1} parent=1 // pred_check
      _
    $region3: #{tpu_custom_call.1} parent=1 // pred_check_branch
      %14 = sbr.rel (0) target = $region5
    $region4: #{tpu_custom_call.1} parent=1 // pred_region
      _
    $region5: #{tpu_custom_call.1} parent=1 // pred_fallthru
      _
    // Predicated region
    $region6: #{tpu_custom_call.1} parent=1 // pred_check
      _
    $region7: #{tpu_custom_call.1} parent=1 // pred_check_branch
      %16 = sbr.rel (0) target = $region9
    $region8: #{tpu_custom_call.1} parent=1 // pred_region
      _
    $region9: #{tpu_custom_call.1} parent=1 // pred_fallthru
      _
    // Predicated region
    $region10: #{tpu_custom_call.1} parent=1 // pred_check
      _
    $region11: #{tpu_custom_call.1} parent=1 // pred_check_branch
      %18 = sbr.rel (0) target = $region13
    $region12: #{tpu_custom_call.1} parent=1 // pred_region
      _
    $region13: #{tpu_custom_call.1} parent=1 // pred_fallthru
      _
    // Predicated region
    $region14: #{tpu_custom_call.1} parent=1 // pred_check
      _
    $region15: #{tpu_custom_call.1} parent=1 // pred_check_branch
      %20 = sbr.rel (0) target = $region17
    $region16: #{tpu_custom_call.1} parent=1 // pred_region
      _
    $region17: #{tpu_custom_call.1} parent=1 // pred_fallthru
      _
    // Predicated region
    $region18: #{tpu_custom_call.1} parent=1 // pred_check
      _
    $region19: #{tpu_custom_call.1} parent=1 // pred_check_branch
      %22 = sbr.rel (0) target = $region21
    $region20: #{tpu_custom_call.1} parent=1 // pred_region
      _
    $region21: #{tpu_custom_call.1} parent=1 // pred_fallthru
      _
    // Predicated region
    $region22: #{tpu_custom_call.1} parent=1 // pred_check
      _
    $region23: #{tpu_custom_call.1} parent=1 // pred_check_branch
      %24 = sbr.rel (0) target = $region25
    $region24: #{tpu_custom_call.1} parent=1 // pred_region
      _
    $region25: #{tpu_custom_call.1} parent=1 // pred_fallthru
      _
    // Predicated region
    $region26: #{tpu_custom_call.1} parent=1 // pred_check
      _
    $region27: #{tpu_custom_call.1} parent=1 // pred_check_branch
      %26 = sbr.rel (0) target = $region29
    $region28: #{tpu_custom_call.1} parent=1 // pred_region
      _
    $region29: #{tpu_custom_call.1} parent=1 // pred_fallthru
      _
    %v27 = vld [vmem:[%s0] sm:$0xf]
    %v28 = vld [vmem:[%s1] sm:$0xff]
    %v29 = vld [vmem:[%s1 + $0x8] sm:$0xff]
    %v30 = vld [vmem:[%s1 + $0x10] sm:$0xff]
    %v31 = vld [vmem:[%s1 + $0x18] sm:$0xff]
    %v32 = vld [vmem:[%s2] sm:$0xff]
    %v33 = vld [vmem:[%s2 + $0x8] sm:$0xff]
    %v34 = vld [vmem:[%s2 + $0x10] sm:$0xff]
    %v35 = vld [vmem:[%s2 + $0x18] sm:$0xff]
    %37 = vset.pattern.permute.xlu0 0
    %38 = vperm.xlu0 %37, %v32
    %v39 = vpop.permute.xlu0 %38
    %42 = vset.pattern.permute.xlu0 0
    %43 = vperm.xlu0 %42, %v33
    %v44 = vpop.permute.xlu0 %43
    %47 = vset.pattern.permute.xlu0 0
    %48 = vperm.xlu0 %47, %v34
    %v49 = vpop.permute.xlu0 %48
    %52 = vset.pattern.permute.xlu0 0
    %53 = vperm.xlu0 %52, %v35
    %v54 = vpop.permute.xlu0 %53
    %vm56 = vcmask 130048
    %v58 = vsel %vm56, %v28, 0
    %v61 = vsel %vm56, %v29, 0
    %v64 = vsel %vm56, %v30, 0
    %v67 = vsel %vm56, %v31, 0
    %v70 = vsel %vm56, %v27, 0
    %72 = vmatprep.subr.mxu0 0.0
    %73 = vmatpush1.xpose.msra.mxu0 %v70
    %74 = vmatprep.subr.mxu0 0.0
    %75 = vmatpush1.xpose.msra.mxu0 0.0
    %76 = vmatprep.subr.mxu0 0.0
    %77 = vmatpush1.xpose.msra.mxu0 0.0
    %78 = vmatprep.subr.mxu0 0.0
    %79 = vmatpush1.xpose.msra.mxu0 0.0
    %80 = vmatprep.subr.mxu0 0.0
    %81 = vmatpush1.xpose.msra.mxu0 0.0
    %82 = vmatprep.subr.mxu0 0.0
    %83 = vmatpush1.xpose.msra.mxu0 0.0
    %84 = vmatprep.subr.mxu0 0.0
    %85 = vmatpush1.xpose.msra.mxu0 0.0
    %86 = vmatprep.subr.mxu0 0.0
    %87 = vmatpush1.xpose.msra.mxu0 0.0
    %88 = vmatprep.subr.mxu0 0.0
    %89 = vmatpush1.xpose.msra.mxu0 0.0
    %90 = vmatprep.subr.mxu0 0.0
    %91 = vmatpush1.xpose.msra.mxu0 0.0
    %92 = vmatprep.subr.mxu0 0.0
    %93 = vmatpush1.xpose.msra.mxu0 0.0
    %94 = vmatprep.subr.mxu0 0.0
    %95 = vmatpush1.xpose.msra.mxu0 0.0
    %96 = vmatprep.subr.mxu0 0.0
    %97 = vmatpush1.xpose.msra.mxu0 0.0
    %98 = vmatprep.subr.mxu0 0.0
    %99 = vmatpush1.xpose.msra.mxu0 0.0
    %100 = vmatprep.subr.mxu0 0.0
    %101 = vmatpush1.xpose.msra.mxu0 0.0
    %102 = vmatprep.subr.mxu0 0.0
    %103 = vmatpush1.xpose.msra.mxu0 0.0
    %104 = vmatprep.subr.mxu0 0.0
    %105 = vmatpush1.xpose.msra.mxu0 0.0
    %106 = vmatprep.subr.mxu0 0.0
    %107 = vmatpush1.xpose.msra.mxu0 0.0
    %108 = vmatprep.subr.mxu0 0.0
    %109 = vmatpush1.xpose.msra.mxu0 0.0
    %110 = vmatprep.subr.mxu0 0.0
    %111 = vmatpush1.xpose.msra.mxu0 0.0
    %112 = vmatprep.subr.mxu0 0.0
    %113 = vmatpush1.xpose.msra.mxu0 0.0
    %114 = vmatprep.subr.mxu0 0.0
    %115 = vmatpush1.xpose.msra.mxu0 0.0
    %116 = vmatprep.subr.mxu0 0.0
    %117 = vmatpush1.xpose.msra.mxu0 0.0
    %118 = vmatprep.subr.mxu0 0.0
    %119 = vmatpush1.xpose.msra.mxu0 0.0
    %120 = vmatprep.subr.mxu0 0.0
    %121 = vmatpush1.xpose.msra.mxu0 0.0
    %122 = vmatprep.subr.mxu0 0.0
    %123 = vmatpush1.xpose.msra.mxu0 0.0
    %124 = vmatprep.subr.mxu0 0.0
    %125 = vmatpush1.xpose.msra.mxu0 0.0
    %126 = vmatprep.subr.mxu0 0.0
    %127 = vmatpush1.xpose.msra.mxu0 0.0
    %128 = vmatprep.subr.mxu0 0.0
    %129 = vmatpush1.xpose.msra.mxu0 0.0
    %130 = vmatprep.subr.mxu0 0.0
    %131 = vmatpush1.xpose.msra.mxu0 0.0
    %132 = vmatprep.subr.mxu0 0.0
    %133 = vmatpush1.xpose.msra.mxu0 0.0
    %134 = vmatprep.subr.mxu0 0.0
    %135 = vmatpush1.xpose.msra.mxu0 0.0
    %136 = vmatprep.mubr.f32.mxu0 0.0
    %137 = vmatmul.mubr.f32.gmra.mrb[0].mxu0 %v58
    %v138 = vpop.f32.mrb[0].mxu0
    %v139 = vadd.f32 %v39, %v138
    %v140 = vpop.f32.mrb[0].mxu0
    %141 = vmatprep.mubr.f32.mxu0 0.0
    %142 = vmatmul.mubr.f32.gmra.mrb[0].mxu0 %v61
    %v143 = vpop.f32.mrb[0].mxu0
    %v144 = vadd.f32 %v44, %v143
    %v145 = vpop.f32.mrb[0].mxu0
    %146 = vmatprep.mubr.f32.mxu0 0.0
    %147 = vmatmul.mubr.f32.gmra.mrb[0].mxu0 %v64
    %v148 = vpop.f32.mrb[0].mxu0
    %v149 = vadd.f32 %v49, %v148
    %v150 = vpop.f32.mrb[0].mxu0
    %151 = vmatprep.mubr.f32.mxu0 0.0
    %152 = vmatmul.mubr.f32.gmra.mrb[0].mxu0 %v67
    %v153 = vpop.f32.mrb[0].mxu0
    %v154 = vadd.f32 %v54, %v153
    %v155 = vpop.f32.mrb[0].mxu0
    %156 = vdwg.mxu0
    %v157 = vtanh.pop %v139
    %v158 = vtanh.pop %v144
    %v159 = vtanh.pop %v149
    %v160 = vtanh.pop %v154
    %v161 = vld [vmem:[%s3] sm:$0xff]
    %v162 = vld [vmem:[%s3 + $0x8] sm:$0xff]
    %v163 = vld [vmem:[%s3 + $0x10] sm:$0xff]
    %v164 = vld [vmem:[%s3 + $0x18] sm:$0xff]
    %v165 = vld [vmem:[%s4] sm:$0xff]
    %v166 = vld [vmem:[%s4 + $0x8] sm:$0xff]
    %v167 = vld [vmem:[%s4 + $0x10] sm:$0xff]
    %v168 = vld [vmem:[%s4 + $0x18] sm:$0xff]
    %170 = vset.pattern.permute.xlu0 0
    %171 = vperm.xlu0 %170, %v165
    %v172 = vpop.permute.xlu0 %171
    %175 = vset.pattern.permute.xlu0 0
    %176 = vperm.xlu0 %175, %v166
    %v177 = vpop.permute.xlu0 %176
    %180 = vset.pattern.permute.xlu0 0
    %181 = vperm.xlu0 %180, %v167
    %v182 = vpop.permute.xlu0 %181
    %185 = vset.pattern.permute.xlu0 0
    %186 = vperm.xlu0 %185, %v168
    %v187 = vpop.permute.xlu0 %186
    %vm189 = vcmask 261120
    %v191 = vsel %vm189, %v161, 0
    %v194 = vsel %vm189, %v162, 0
    %v197 = vsel %vm189, %v163, 0
    %v200 = vsel %vm189, %v164, 0
    %202 = vmatprep.subr.mxu0 0.0
    %203 = vmatpush1.msra.mxu0 %v157
    %204 = vmatprep.subr.mxu0 0.0
    %205 = vmatpush1.msra.mxu0 %v158
    %206 = vmatprep.subr.mxu0 0.0
    %207 = vmatpush1.msra.mxu0 %v159
    %208 = vmatprep.subr.mxu0 0.0
    %209 = vmatpush1.msra.mxu0 %v160
    %210 = vmatprep.subr.mxu0 0.0
    %211 = vmatpush1.msra.mxu0 0.0
    %212 = vmatprep.subr.mxu0 0.0
    %213 = vmatpush1.msra.mxu0 0.0
    %214 = vmatprep.subr.mxu0 0.0
    %215 = vmatpush1.msra.mxu0 0.0
    %216 = vmatprep.subr.mxu0 0.0
    %217 = vmatpush1.msra.mxu0 0.0
    %218 = vmatprep.subr.mxu0 0.0
    %219 = vmatpush1.msra.mxu0 0.0
    %220 = vmatprep.subr.mxu0 0.0
    %221 = vmatpush1.msra.mxu0 0.0
    %222 = vmatprep.subr.mxu0 0.0
    %223 = vmatpush1.msra.mxu0 0.0
    %224 = vmatprep.subr.mxu0 0.0
    %225 = vmatpush1.msra.mxu0 0.0
    %226 = vmatprep.subr.mxu0 0.0
    %227 = vmatpush1.msra.mxu0 0.0
    %228 = vmatprep.subr.mxu0 0.0
    %229 = vmatpush1.msra.mxu0 0.0
    %230 = vmatprep.subr.mxu0 0.0
    %231 = vmatpush1.msra.mxu0 0.0
    %232 = vmatprep.subr.mxu0 0.0
    %233 = vmatpush1.msra.mxu0 0.0
    %234 = vmatprep.subr.mxu0 0.0
    %235 = vmatpush1.msra.mxu0 0.0
    %236 = vmatprep.subr.mxu0 0.0
    %237 = vmatpush1.msra.mxu0 0.0
    %238 = vmatprep.subr.mxu0 0.0
    %239 = vmatpush1.msra.mxu0 0.0
    %240 = vmatprep.subr.mxu0 0.0
    %241 = vmatpush1.msra.mxu0 0.0
    %242 = vmatprep.subr.mxu0 0.0
    %243 = vmatpush1.msra.mxu0 0.0
    %244 = vmatprep.subr.mxu0 0.0
    %245 = vmatpush1.msra.mxu0 0.0
    %246 = vmatprep.subr.mxu0 0.0
    %247 = vmatpush1.msra.mxu0 0.0
    %248 = vmatprep.subr.mxu0 0.0
    %249 = vmatpush1.msra.mxu0 0.0
    %250 = vmatprep.subr.mxu0 0.0
    %251 = vmatpush1.msra.mxu0 0.0
    %252 = vmatprep.subr.mxu0 0.0
    %253 = vmatpush1.msra.mxu0 0.0
    %254 = vmatprep.subr.mxu0 0.0
    %255 = vmatpush1.msra.mxu0 0.0
    %256 = vmatprep.subr.mxu0 0.0
    %257 = vmatpush1.msra.mxu0 0.0
    %258 = vmatprep.subr.mxu0 0.0
    %259 = vmatpush1.msra.mxu0 0.0
    %260 = vmatprep.subr.mxu0 0.0
    %261 = vmatpush1.msra.mxu0 0.0
    %262 = vmatprep.subr.mxu0 0.0
    %263 = vmatpush1.msra.mxu0 0.0
    %264 = vmatprep.subr.mxu0 0.0
    %265 = vmatpush1.msra.mxu0 0.0
    %266 = vmatprep.mubr.f32.mxu0 0.0
    %267 = vmatmul.mubr.f32.gmra.mrb[0].mxu0 %v191
    %v268 = vpop.f32.mrb[0].mxu0
    %v269 = vadd.f32 %v172, %v268
    %v270 = vpop.f32.mrb[0].mxu0
    %271 = vmatprep.mubr.f32.mxu0 0.0
    %272 = vmatmul.mubr.f32.gmra.mrb[0].mxu0 %v194
    %v273 = vpop.f32.mrb[0].mxu0
    %v274 = vadd.f32 %v177, %v273
    %v275 = vpop.f32.mrb[0].mxu0
    %276 = vmatprep.mubr.f32.mxu0 0.0
    %277 = vmatmul.mubr.f32.gmra.mrb[0].mxu0 %v197
    %v278 = vpop.f32.mrb[0].mxu0
    %v279 = vadd.f32 %v182, %v278
    %v280 = vpop.f32.mrb[0].mxu0
    %281 = vmatprep.mubr.f32.mxu0 0.0
    %282 = vmatmul.mubr.f32.gmra.mrb[0].mxu0 %v200
    %v283 = vpop.f32.mrb[0].mxu0
    %v284 = vadd.f32 %v187, %v283
    %v285 = vpop.f32.mrb[0].mxu0
    %286 = vdwg.mxu0
    %v287 = vtanh.pop %v269
    %v288 = vtanh.pop %v274
    %v289 = vtanh.pop %v279
    %v290 = vtanh.pop %v284
    %v291 = vld [vmem:[%s5] sm:$0xff]
    %v292 = vld [vmem:[%s6] sm:$0x1]
    %v294 = vlaneseq
    %v295 = vshrl.u32 %v294, 7
    %v296 = vsub.s32 0, %v295
    %v297 = vrot.slane %v292, %v296
    %299 = vxpose.xlu0.b32.start [1/16] %v287, 128
    %300 = vxpose.xlu0.b32.cont [2/16] %v288, 128
    %301 = vxpose.xlu0.b32.cont [3/16] %v289, 128
    %302 = vxpose.xlu0.b32.cont [4/16] %v290, 128
    %303 = vxpose.xlu0.b32.cont [5/16] 0.0, 128
    %304 = vxpose.xlu0.b32.cont [6/16] 0.0, 128
    %305 = vxpose.xlu0.b32.cont [7/16] 0.0, 128
    %306 = vxpose.xlu0.b32.cont [8/16] 0.0, 128
    %307 = vxpose.xlu0.b32.cont [9/16] 0.0, 128
    %308 = vxpose.xlu0.b32.cont [10/16] 0.0, 128
    %309 = vxpose.xlu0.b32.cont [11/16] 0.0, 128
    %310 = vxpose.xlu0.b32.cont [12/16] 0.0, 128
    %311 = vxpose.xlu0.b32.cont [13/16] 0.0, 128
    %312 = vxpose.xlu0.b32.cont [14/16] 0.0, 128
    %313 = vxpose.xlu0.b32.cont [15/16] 0.0, 128
    %314 = vxpose.xlu0.b32.end [16/16] 0.0, 128
    %v315 = vpop.trf.xlu0
    %v316 = vpop.trf.xlu0
    %v317 = vpop.trf.xlu0
    %v318 = vpop.trf.xlu0
    %v319 = vpop.trf.xlu0
    %v320 = vpop.trf.xlu0
    %v321 = vpop.trf.xlu0
    %v322 = vpop.trf.xlu0
    %v323 = vpop.trf.xlu0
    %v324 = vpop.trf.xlu0
    %v325 = vpop.trf.xlu0
    %v326 = vpop.trf.xlu0
    %v327 = vpop.trf.xlu0
    %v328 = vpop.trf.xlu0
    %v329 = vpop.trf.xlu0
    %v330 = vpop.trf.xlu0
    %v332 = vsel %vm189, %v315, 0
    %v335 = vsel %vm189, %v291, 0
    %337 = vmatprep.subr.mxu0 0.0
    %338 = vmatpush1.xpose.msra.mxu0 %v335
    %339 = vmatprep.subr.mxu0 0.0
    %340 = vmatpush1.xpose.msra.mxu0 0.0
    %341 = vmatprep.subr.mxu0 0.0
    %342 = vmatpush1.xpose.msra.mxu0 0.0
    %343 = vmatprep.subr.mxu0 0.0
    %344 = vmatpush1.xpose.msra.mxu0 0.0
    %345 = vmatprep.subr.mxu0 0.0
    %346 = vmatpush1.xpose.msra.mxu0 0.0
    %347 = vmatprep.subr.mxu0 0.0
    %348 = vmatpush1.xpose.msra.mxu0 0.0
    %349 = vmatprep.subr.mxu0 0.0
    %350 = vmatpush1.xpose.msra.mxu0 0.0
    %351 = vmatprep.subr.mxu0 0.0
    %352 = vmatpush1.xpose.msra.mxu0 0.0
    %353 = vmatprep.subr.mxu0 0.0
    %354 = vmatpush1.xpose.msra.mxu0 0.0
    %355 = vmatprep.subr.mxu0 0.0
    %356 = vmatpush1.xpose.msra.mxu0 0.0
    %357 = vmatprep.subr.mxu0 0.0
    %358 = vmatpush1.xpose.msra.mxu0 0.0
    %359 = vmatprep.subr.mxu0 0.0
    %360 = vmatpush1.xpose.msra.mxu0 0.0
    %361 = vmatprep.subr.mxu0 0.0
    %362 = vmatpush1.xpose.msra.mxu0 0.0
    %363 = vmatprep.subr.mxu0 0.0
    %364 = vmatpush1.xpose.msra.mxu0 0.0
    %365 = vmatprep.subr.mxu0 0.0
    %366 = vmatpush1.xpose.msra.mxu0 0.0
    %367 = vmatprep.subr.mxu0 0.0
    %368 = vmatpush1.xpose.msra.mxu0 0.0
    %369 = vmatprep.subr.mxu0 0.0
    %370 = vmatpush1.xpose.msra.mxu0 0.0
    %371 = vmatprep.subr.mxu0 0.0
    %372 = vmatpush1.xpose.msra.mxu0 0.0
    %373 = vmatprep.subr.mxu0 0.0
    %374 = vmatpush1.xpose.msra.mxu0 0.0
    %375 = vmatprep.subr.mxu0 0.0
    %376 = vmatpush1.xpose.msra.mxu0 0.0
    %377 = vmatprep.subr.mxu0 0.0
    %378 = vmatpush1.xpose.msra.mxu0 0.0
    %379 = vmatprep.subr.mxu0 0.0
    %380 = vmatpush1.xpose.msra.mxu0 0.0
    %381 = vmatprep.subr.mxu0 0.0
    %382 = vmatpush1.xpose.msra.mxu0 0.0
    %383 = vmatprep.subr.mxu0 0.0
    %384 = vmatpush1.xpose.msra.mxu0 0.0
    %385 = vmatprep.subr.mxu0 0.0
    %386 = vmatpush1.xpose.msra.mxu0 0.0
    %387 = vmatprep.subr.mxu0 0.0
    %388 = vmatpush1.xpose.msra.mxu0 0.0
    %389 = vmatprep.subr.mxu0 0.0
    %390 = vmatpush1.xpose.msra.mxu0 0.0
    %391 = vmatprep.subr.mxu0 0.0
    %392 = vmatpush1.xpose.msra.mxu0 0.0
    %393 = vmatprep.subr.mxu0 0.0
    %394 = vmatpush1.xpose.msra.mxu0 0.0
    %395 = vmatprep.subr.mxu0 0.0
    %396 = vmatpush1.xpose.msra.mxu0 0.0
    %397 = vmatprep.subr.mxu0 0.0
    %398 = vmatpush1.xpose.msra.mxu0 0.0
    %399 = vmatprep.subr.mxu0 0.0
    %400 = vmatpush1.xpose.msra.mxu0 0.0
    %401 = vmatprep.mubr.f32.mxu0 0.0
    %402 = vmatmul.mubr.f32.gmra.mrb[0].mxu0 %v332
    %v403 = vpop.f32.mrb[0].mxu0
    %v404 = vadd.f32 %v297, %v403
    %v405 = vpop.f32.mrb[0].mxu0
    %406 = vdwg.mxu0
    %vm407 = vcmask 60416
    %408 = vst.msk [vmem:[#allocation2] sm:$0xf] %vm407, %v404
    // Predicated region
    $region30: #{tpu_custom_call.1} parent=1 // pred_check
      _
    $region31: #{tpu_custom_call.1} parent=1 // pred_check_branch
      %410 = sbr.rel (0) target = $region33
    $region32: #{tpu_custom_call.1} parent=1 // pred_region
      %s412 = ssub.s32 64, 64
      %413 = vsyncadd [#allocation3], %s412
      %s415 = sshll.u32 [#allocation2], 4
      %s416 = int_to_ptr.vmem [resolvable:$true] %s415
      %418 = dma.vmem_to_hbm [thread:$0]  %s416, 64, %s7, [#allocation3]
    $region33: #{tpu_custom_call.1} parent=1 // pred_fallthru
      _
    // Predicated region
    $region34: #{tpu_custom_call.1} parent=1 // pred_check
      _
    $region35: #{tpu_custom_call.1} parent=1 // pred_check_branch
      %420 = sbr.rel (0) target = $region37
    $region36: #{tpu_custom_call.1} parent=1 // pred_region
      %421 = dma.done [#allocation3], 64
    $region37: #{tpu_custom_call.1} parent=1 // pred_fallthru
      _
    %422 = vsyncpa [#allocation3], 1

</llo_original>
